<compile_context>
chip_gen: v5e
topology: v5e:2x2
jax: 0.10.0
libtpu: 0.0.40
codegen_flags: <defaults>
</compile_context>

<pallas_src>
import jax
import jax.numpy as jnp
from jax.experimental import pallas as pl
from jax.experimental.pallas import tpu as pltpu

EXPERT_DIM = 128
LN_EPS = 1e-5


def tabular_expert_kernel(x_ref, w_ref, b_ref, o_ref):
    # x_ref: (tm, D) input rows        w_ref: (D, OUT) fused weight
    # b_ref: (1, OUT) fused bias (f32) o_ref: (tm, OUT)
    x = x_ref[...].astype(jnp.float32)

    # LayerNorm statistics over the feature axis (biased variance, eps=1e-5,
    # matching torch.nn.LayerNorm).  Affine (gamma/beta) is folded into w/b.
    mean = jnp.mean(x, axis=-1, keepdims=True)
    xc = x - mean                                   # two-pass var: stable
    var = jnp.mean(xc * xc, axis=-1, keepdims=True)
    inv_std = jax.lax.rsqrt(var + LN_EPS)           # (tm, 1) f32

    # (xc * inv_std) @ W  ==  inv_std * (xc @ W)  -- scale the [tm, OUT] f32
    # accumulator instead of materializing an xn [tm, D] temporary.
    y = jnp.dot(xc.astype(w_ref.dtype), w_ref[...],
                preferred_element_type=jnp.float32)
    y = y * inv_std + b_ref[...]
    o_ref[...] = y.astype(o_ref.dtype)


def _round_up(x, m):
    return ((x + m - 1) // m) * m


def tabular_expert(raw_feats, gamma, beta, weight, bias, *, tm=4096,
                   out_dtype=None):
    """raw_feats: [B, T, D_feat] -> [B, T, EXPERT_DIM]"""
    B, T, D = raw_feats.shape
    out_dim = weight.shape[0]          # torch Linear weight is [out, in]
    M = B * T
    in_dtype = raw_feats.dtype
    out_dtype = jnp.dtype(in_dtype if out_dtype is None else out_dtype)

    # --- Fold the LayerNorm affine into the Linear (done once, in f32). ---
    w32 = weight.astype(jnp.float32)                       # [out, D]
    g32 = gamma.astype(jnp.float32)
    b32 = beta.astype(jnp.float32)
    w_fused = (w32.T * g32[:, None]).astype(in_dtype)      # [D, out]
    b_fused = (b32 @ w32.T + bias.astype(jnp.float32)).reshape(1, out_dim)  # f32

    isz = jnp.dtype(in_dtype).itemsize
    osz = jnp.dtype(out_dtype).itemsize
    d_lanes = _round_up(D, 128)        # lane padding of a (., D) VMEM tile
    out_lanes = _round_up(out_dim, 128)

    # VMEM footprint for a row tile of t rows (double-buffered I/O tiles,
    # resident weight/bias, plus in-kernel f32 temporaries).
    def _vmem_need(t):
        return (2 * t * d_lanes * isz              # x tiles (double-buffered)
                + 2 * t * out_lanes * osz          # out tiles (double-buffered)
                + _round_up(D, 8) * out_lanes * isz  # fused W (resident)
                + 8 * out_lanes * 4                # fused bias (8-sublane pad, f32)
                + 3 * t * d_lanes * 4              # f32 temps: x, xc, xc*xc
                + 2 * t * out_lanes * 4)           # f32 matmul acc / y

    # Per-generation VMEM ceiling with ~25% headroom for semaphores/internal
    # scratch (v7x has only 64 MiB per TensorCore; v5e/v6e have 128 MiB).
    vmem_cap = 64 * 1024 * 1024
    try:
        vmem_cap = int(getattr(pltpu.get_tpu_info(), "vmem_capacity_bytes",
                               vmem_cap))
    except Exception:
        pass
    vmem_ceiling = (3 * vmem_cap) // 4

    # --- Row tile selection: large, multiple of 8, never bigger than the
    #     8-padded row count; >=2 grid steps when possible (v7x megacore);
    #     shrink until the footprint fits under the per-generation ceiling.
    #     No wrapper pad: the ragged last block uses masked partial writes. ---
    tm = int(tm)
    tm = min(tm, _round_up(M, 8))
    if M >= 16:
        tm = min(tm, _round_up(pl.cdiv(M, 2), 8))
    tm = max(8, _round_up(tm, 8))
    while tm > 8 and _vmem_need(tm) > vmem_ceiling:
        tm = max(8, _round_up(tm // 2, 8))
    vmem_need = _vmem_need(tm)

    grid = (pl.cdiv(M, tm),)
    x2d = raw_feats.reshape(M, D)

    if vmem_need > 12 * 1024 * 1024:
        compiler_params = pltpu.CompilerParams(
            dimension_semantics=("parallel",),
            vmem_limit_bytes=min(vmem_ceiling,
                                 max(vmem_need * 3 // 2, 32 * 1024 * 1024)))
    else:
        compiler_params = pltpu.CompilerParams(
            dimension_semantics=("parallel",))

    # Resident operands: single-buffer them only when the fused weight is big
    # enough for the saving to matter (at D=32 it is ~16 KiB -> skip).
    resident_kwargs = {}
    if D * out_dim * isz >= (1 << 20):
        resident_kwargs = dict(pipeline_mode=pl.Buffered(1))

    out = pl.pallas_call(
        tabular_expert_kernel,
        out_shape=jax.ShapeDtypeStruct((M, out_dim), out_dtype),
        grid_spec=pl.GridSpec(
            grid=grid,
            in_specs=[
                pl.BlockSpec((tm, D), lambda i: (i, 0)),          # x rows
                pl.BlockSpec((D, out_dim), lambda i: (0, 0),      # fused W
                             **resident_kwargs),
                pl.BlockSpec((1, out_dim), lambda i: (0, 0),      # fused bias
                             **resident_kwargs),
            ],
            out_specs=pl.BlockSpec((tm, out_dim), lambda i: (i, 0)),
        ),
        compiler_params=compiler_params,
    )(x2d, w_fused, b_fused)

    return out.reshape(B, T, out_dim)


def reference(raw_feats, gamma, beta, weight, bias):
    x = raw_feats.astype(jnp.float32)
    mean = jnp.mean(x, axis=-1, keepdims=True)
    var = jnp.mean((x - mean) ** 2, axis=-1, keepdims=True)
    xn = (x - mean) * jax.lax.rsqrt(var + LN_EPS)
    xn = xn * gamma + beta
    return xn @ weight.T + bias


if __name__ == "__main__":
    key = jax.random.PRNGKey(0)
    B, T, D_feat = 2, 8, 32
    k_x, k_g, k_b, k_w, k_bias = jax.random.split(key, 5)

    raw_feats = jax.random.normal(k_x, (B, T, D_feat), dtype=jnp.float32)

    # Deterministic "module init": LayerNorm gamma~1, beta~0 slightly perturbed;
    # Linear weight/bias from a fixed PRNG (shapes from nn.Linear(D_feat, 128)).
    gamma = jnp.ones((D_feat,), jnp.float32) + 0.01 * jax.random.normal(k_g, (D_feat,))
    beta = 0.01 * jax.random.normal(k_b, (D_feat,))
    weight = jax.random.normal(k_w, (EXPERT_DIM, D_feat), dtype=jnp.float32) * (1.0 / jnp.sqrt(D_feat))
    bias = 0.01 * jax.random.normal(k_bias, (EXPERT_DIM,))

    out = tabular_expert(raw_feats, gamma, beta, weight, bias)
    out = jax.block_until_ready(out)

    ref = reference(raw_feats, gamma, beta, weight, bias)
    assert out.shape == (B, T, EXPERT_DIM), out.shape
    assert jnp.allclose(out, ref, atol=1e-4, rtol=1e-4), float(jnp.max(jnp.abs(out - ref)))
    print("KERNEL_OK")
</pallas_src>

<mosaic_0001>
module attributes {stable_mosaic.version = 11 : i64} {
  func.func @tabular_expert_kernel(%arg0: i32, %arg1: memref<8x32xf32, #tpu.memory_space<vmem>>, %arg2: memref<32x128xf32, #tpu.memory_space<vmem>>, %arg3: memref<1x128xf32, #tpu.memory_space<vmem>>, %arg4: memref<8x128xf32, #tpu.memory_space<vmem>>) attributes {dimension_semantics = [#tpu.dimension_semantics<parallel>], iteration_bounds = array<i64: 2>, scalar_prefetch = 0 : i64, scratch_operands = 0 : i64, tpu.core_type = #tpu.core_type<tc>, window_params = [{transform_indices = @transform_0, window_bounds = array<i64: 8, 32>}, {pipeline_mode = #tpu.pipeline_mode<synchronous>, transform_indices = @transform_1, window_bounds = array<i64: 32, 128>}, {pipeline_mode = #tpu.pipeline_mode<synchronous>, transform_indices = @transform_2, window_bounds = array<i64: 1, 128>}, {transform_indices = @transform_3, window_bounds = array<i64: 8, 128>}]} {
    %c0 = arith.constant 0 : index
    %c0_0 = arith.constant 0 : index
    %0 = vector.load %arg1[%c0, %c0_0] : memref<8x32xf32, #tpu.memory_space<vmem>>, vector<8x32xf32>
    %cst = arith.constant dense<0.000000e+00> : vector<8xf32>
    %1 = vector.multi_reduction <add>, %0, %cst [1] : vector<8x32xf32> to vector<8xf32>
    %2 = vector.shape_cast %1 : vector<8xf32> to vector<8x1xf32>
    %cst_1 = arith.constant 3.200000e+01 : f32
    %3 = vector.broadcast %cst_1 : f32 to vector<8x1xf32>
    %4 = arith.divf %2, %3 : vector<8x1xf32>
    %5 = vector.broadcast %4 : vector<8x1xf32> to vector<8x32xf32>
    %6 = arith.subf %0, %5 : vector<8x32xf32>
    %7 = arith.mulf %6, %6 : vector<8x32xf32>
    %cst_2 = arith.constant dense<0.000000e+00> : vector<8xf32>
    %8 = vector.multi_reduction <add>, %7, %cst_2 [1] : vector<8x32xf32> to vector<8xf32>
    %9 = vector.shape_cast %8 : vector<8xf32> to vector<8x1xf32>
    %cst_3 = arith.constant 3.200000e+01 : f32
    %10 = vector.broadcast %cst_3 : f32 to vector<8x1xf32>
    %11 = arith.divf %9, %10 : vector<8x1xf32>
    %cst_4 = arith.constant 9.99999974E-6 : f32
    %12 = vector.broadcast %cst_4 : f32 to vector<8x1xf32>
    %13 = arith.addf %11, %12 : vector<8x1xf32>
    %14 = math.rsqrt %13 : vector<8x1xf32>
    %c0_5 = arith.constant 0 : index
    %c0_6 = arith.constant 0 : index
    %15 = vector.load %arg2[%c0_5, %c0_6] : memref<32x128xf32, #tpu.memory_space<vmem>>, vector<32x128xf32>
    %cst_7 = arith.constant dense<0.000000e+00> : vector<8x128xf32>
    %16 = tpu.matmul %6, %15, %cst_7 {dimension_numbers = #tpu.dot_dimension_numbers<[1], [0], [0], [1], [0, 0, 1, 1], [], []>} : vector<8x32xf32>, vector<32x128xf32>, vector<8x128xf32> -> vector<8x128xf32>
    %17 = vector.broadcast %14 : vector<8x1xf32> to vector<8x128xf32>
    %18 = arith.mulf %16, %17 : vector<8x128xf32>
    %c0_8 = arith.constant 0 : index
    %c0_9 = arith.constant 0 : index
    %19 = vector.load %arg3[%c0_8, %c0_9] : memref<1x128xf32, #tpu.memory_space<vmem>>, vector<1x128xf32>
    %20 = vector.broadcast %19 : vector<1x128xf32> to vector<8x128xf32>
    %21 = arith.addf %18, %20 : vector<8x128xf32>
    %c0_10 = arith.constant 0 : index
    %c0_11 = arith.constant 0 : index
    %22 = vector.load %arg4[%c0_10, %c0_11] : memref<8x128xf32, #tpu.memory_space<vmem>>, vector<8x128xf32>
    tpu.vector_store %arg4[%c0_10, %c0_11], %21 {strides = array<i32>} : memref<8x128xf32, #tpu.memory_space<vmem>>, vector<8x128xf32>,
    return
  }
  func.func @transform_0(%arg0: i32) -> (i32, i32) {
    %c0_i32 = arith.constant 0 : i32
    %c0_i32_0 = arith.constant 0 : i32
    return %arg0, %c0_i32 : i32, i32
  }
  func.func @transform_1(%arg0: i32) -> (i32, i32) {
    %c0_i32 = arith.constant 0 : i32
    %c0_i32_0 = arith.constant 0 : i32
    %c0_i32_1 = arith.constant 0 : i32
    return %c0_i32, %c0_i32_0 : i32, i32
  }
  func.func @transform_2(%arg0: i32) -> (i32, i32) {
    %c0_i32 = arith.constant 0 : i32
    %c0_i32_0 = arith.constant 0 : i32
    %c0_i32_1 = arith.constant 0 : i32
    return %c0_i32, %c0_i32_0 : i32, i32
  }
  func.func @transform_3(%arg0: i32) -> (i32, i32) {
    %c0_i32 = arith.constant 0 : i32
    %c0_i32_0 = arith.constant 0 : i32
    return %arg0, %c0_i32 : i32, i32
  }
}

</mosaic_0001>

<llo_original>
// kernel: tpu_custom_call.1
$region0: #{tpu_custom_call.1}
  #allocation0 [shape = 'u32[]', space=smem, size = 0x4, offset = 0x4, fixed_abs, tag = 'smem constant byte address 0x4 - core index']
  #allocation1 [shape = 'u32[72,128]{1,0:T(1,128)}', space=vmem, size = 0x9000, scoped, tag = 'internal scratch']
  %s0 = inlined_call_operand.hbm [shape: f32[16,32], index: 0, kind: input, shape index: {}]
  %s1 = inlined_call_operand.hbm [shape: f32[32,128], index: 1, kind: input, shape index: {}]
  %s2 = inlined_call_operand.vmem [shape: f32[1,128], index: 2, kind: input, shape index: {}]
  %s3 = inlined_call_operand.hbm [shape: f32[16,128], index: 3, kind: output, shape index: {}]
  %s4 = sld [smem:[#allocation0]]
  $region53: #{tpu_custom_call.1} parent=0
    _
  %s6 = ssub.s32 1, %s4
  %s7 = scalar_select 0, %s6, %s4
  $region1: #{tpu_custom_call.1} parent=0
    #allocation2 [shape = 'u8[8192]{0}', space=vmem, size = 0x2000, scoped, tag = 'input window, operand 0']
    #allocation3 [shape = 's32[2]{0}', space=sflag, size = 0x8, scoped, tag = 'scoped memory for tpu_custom_call.1']
    #allocation4 [shape = 's32[2]{0}', space=sflag, size = 0x8, scoped, tag = 'scoped memory for tpu_custom_call.1']
    #allocation5 [shape = 'u8[16384]{0}', space=vmem, size = 0x4000, scoped, tag = 'input window, operand 1, single buffered']
    #allocation6 [shape = 's32[1]{0}', space=sflag, size = 0x4, scoped, tag = 'scoped memory for tpu_custom_call.1']
    #allocation7 [shape = 'u8[8192]{0}', space=vmem, size = 0x2000, scoped, tag = 'output window, operand 0']
    %8 = vsyncpa [#allocation3], 0
    %s9 = scalar_lea.sflag [#allocation3], 1
    %10 = vsyncpa %s9, 0
    %11 = vsyncpa [#allocation6], 0
    %12 = vsyncpa [#allocation4], 0
    %s13 = scalar_lea.sflag [#allocation4], 1
    %14 = vsyncpa %s13, 0
    loop: start=0, step=1, limit=4
    $region2: #{tpu_custom_call.1} parent=1 // loop_pre_header
      _
    $region3: #{tpu_custom_call.1} parent=1 // loop_header
      %s16 = sphi 0, %s20
      %p17 = scmp.ge.s32.totalorder %s16, 4
      %s26 = sphi 0, %s28
      %s29 = sphi 0, %s26
      %s30 = sphi 0, %s29
      %s46 = sphi 0, %s30
      %s50 = sphi 0, %s50
      %s52 = sphi 0, %s50
      %s53 = sphi 0, %s52
      %s67 = sphi 0, %s53
      %s71 = sphi 0, %s71
      %s73 = sphi 0, %s71
      %s74 = sphi 0, %s73
      %s88 = sphi 0, %s74
      %s94 = sphi 0, %s96
      %s97 = sphi 0, %s94
      %s98 = sphi 0, %s97
      %s114 = sphi 0, %s98
    $region4: #{tpu_custom_call.1} parent=1 // loop_header_branch
      %19 = sbr.rel (%p17) target = $region8
    $region5: #{tpu_custom_call.1} parent=1 // loop_body
      %s21 = ssub.s32 %s16, 1
      %s22 = ssub.s32 %s16, 2
      %s23 = sadd.s32 %s16, 1
      %s24 = ssub.s32 %s16, %s23
      %p25 = scmp.eq.s32.totalorder %s24, 0
      %s27 = sadd.s32 %s26, 1
      %s28 = scalar_select %p25, %s26, %s27
      %p31 = pneg %p25
      %p32 = scmp.eq.s32.totalorder %s16, 1
      %p33 = por %p31, %p32
      %p34 = scmp.ne.s32.totalorder %s26, %s29
      %p35 = scmp.eq.s32.totalorder %s16, 0
      %p36 = por %p34, %p35
      %p37 = scmp.ne.s32.totalorder %s26, %s29
      %p38 = scmp.eq.s32.totalorder %s21, 1
      %p39 = por %p37, %p38
      %p40 = scmp.ne.s32.totalorder %s29, %s30
      %p41 = scmp.eq.s32.totalorder %s21, 0
      %p42 = por %p40, %p41
      %p43 = scmp.ne.s32.totalorder %s29, %s30
      %p44 = scmp.eq.s32.totalorder %s22, 1
      %p45 = por %p43, %p44
      %p47 = scmp.ne.s32.totalorder %s30, %s46
      %p48 = scmp.eq.s32.totalorder %s22, 0
      %p49 = por %p47, %p48
      %s51 = sadd.s32 %s50, 1
      %p54 = scmp.eq.s32.totalorder %s16, 1
      %p55 = scmp.ne.s32.totalorder %s50, %s52
      %p56 = scmp.eq.s32.totalorder %s16, 0
      %p57 = por %p55, %p56
      %p58 = scmp.ne.s32.totalorder %s50, %s52
      %p59 = scmp.eq.s32.totalorder %s21, 1
      %p60 = por %p58, %p59
      %p61 = scmp.ne.s32.totalorder %s52, %s53
      %p62 = scmp.eq.s32.totalorder %s21, 0
      %p63 = por %p61, %p62
      %p64 = scmp.ne.s32.totalorder %s52, %s53
      %p65 = scmp.eq.s32.totalorder %s22, 1
      %p66 = por %p64, %p65
      %p68 = scmp.ne.s32.totalorder %s53, %s67
      %p69 = scmp.eq.s32.totalorder %s22, 0
      %p70 = por %p68, %p69
      %s72 = sadd.s32 %s71, 1
      %p75 = scmp.eq.s32.totalorder %s16, 1
      %p76 = scmp.ne.s32.totalorder %s71, %s73
      %p77 = scmp.eq.s32.totalorder %s16, 0
      %p78 = por %p76, %p77
      %p79 = scmp.ne.s32.totalorder %s71, %s73
      %p80 = scmp.eq.s32.totalorder %s21, 1
      %p81 = por %p79, %p80
      %p82 = scmp.ne.s32.totalorder %s73, %s74
      %p83 = scmp.eq.s32.totalorder %s21, 0
      %p84 = por %p82, %p83
      %p85 = scmp.ne.s32.totalorder %s73, %s74
      %p86 = scmp.eq.s32.totalorder %s22, 1
      %p87 = por %p85, %p86
      %p89 = scmp.ne.s32.totalorder %s74, %s88
      %p90 = scmp.eq.s32.totalorder %s22, 0
      %p91 = por %p89, %p90
      %s92 = ssub.s32 %s16, %s23
      %p93 = scmp.eq.s32.totalorder %s92, 0
      %s95 = sadd.s32 %s94, 1
      %s96 = scalar_select %p93, %s94, %s95
      %p99 = pneg %p93
      %p100 = scmp.eq.s32.totalorder %s16, 1
      %p101 = por %p99, %p100
      %p102 = scmp.ne.s32.totalorder %s94, %s97
      %p103 = scmp.eq.s32.totalorder %s16, 0
      %p104 = por %p102, %p103
      %p105 = scmp.ne.s32.totalorder %s94, %s97
      %p106 = scmp.eq.s32.totalorder %s21, 1
      %p107 = por %p105, %p106
      %p108 = scmp.ne.s32.totalorder %s97, %s98
      %p109 = scmp.eq.s32.totalorder %s21, 0
      %p110 = por %p108, %p109
      %p111 = scmp.ne.s32.totalorder %s97, %s98
      %p112 = scmp.eq.s32.totalorder %s22, 1
      %p113 = por %p111, %p112
      %p115 = scmp.ne.s32.totalorder %s98, %s114
      %p116 = scmp.eq.s32.totalorder %s22, 0
      %p117 = por %p115, %p116
      %p118 = scmp.le.s32.totalorder 1, %s16
      %p119 = scmp.lt.s32.totalorder %s16, 3
      %p120 = pnand %p118, %p119
      %p121 = pneg %p120
      // Predicated region
      $region9: #{tpu_custom_call.1} parent=5 // pred_check
        _
      $region10: #{tpu_custom_call.1} parent=5 // pred_check_branch
        %123 = sbr.rel (%p120) target = $region12
      $region11: #{tpu_custom_call.1} parent=5 // pred_region
        %s124 = ssub.s32 %s16, 1
        // Predicated region
        $region13: #{tpu_custom_call.1} parent=11 // pred_check
          %p125 = pneg %p63
        $region14: #{tpu_custom_call.1} parent=11 // pred_check_branch
          %127 = sbr.rel (%p125) target = $region16
        $region15: #{tpu_custom_call.1} parent=11 // pred_region
          %129 = vsyncadd [#allocation6], 0
          %s130 = sshll.u32 %s1, 4
          %s131 = int_to_ptr.hbm [resolvable:$true] %s130
          %s132 = sshll.u32 [#allocation5], 4
          %s133 = int_to_ptr.vmem [resolvable:$true] %s132
          %138 = dma.hbm_to_vmem [thread:$0]  %s131, 512, %s133, [#allocation6], 128, 128, 8
        $region16: #{tpu_custom_call.1} parent=11 // pred_fallthru
          _
        // Predicated region
        $region17: #{tpu_custom_call.1} parent=11 // pred_check
          %p139 = pneg %p84
        $region18: #{tpu_custom_call.1} parent=11 // pred_check_branch
          %141 = sbr.rel (%p139) target = $region20
        $region19: #{tpu_custom_call.1} parent=11 // pred_region
          _
        $region20: #{tpu_custom_call.1} parent=11 // pred_fallthru
          _
      $region12: #{tpu_custom_call.1} parent=5 // pred_fallthru
        _
      %p142 = scmp.lt.s32.totalorder %s16, 2
      // Predicated region
      $region21: #{tpu_custom_call.1} parent=5 // pred_check
        %p143 = pneg %p142
      $region22: #{tpu_custom_call.1} parent=5 // pred_check_branch
        %145 = sbr.rel (%p143) target = $region24
      $region23: #{tpu_custom_call.1} parent=5 // pred_region
        // Predicated region
        $region25: #{tpu_custom_call.1} parent=23 // pred_check
          %p146 = pneg %p36
        $region26: #{tpu_custom_call.1} parent=23 // pred_check_branch
          %148 = sbr.rel (%p146) target = $region28
        $region27: #{tpu_custom_call.1} parent=23 // pred_region
          %s149 = sand.u32 %s26, 1
          %s150 = scalar_lea.sflag [#allocation3], %s149
          %s151 = sand.u32 %s26, 1
          %s152 = smul.addr %s151, 8
          %s153 = scalar_lea.vmem [#allocation2], %s152
          %155 = vsyncadd %s150, 0
          %s156 = smul.addr %s16, 8
          %s157 = scalar_lea.hbm %s0, %s156
          %s159 = sshll.u32 %s157, 4
          %s160 = int_to_ptr.hbm [resolvable:$true] %s159
          %s161 = sshll.u32 %s153, 4
          %s162 = int_to_ptr.vmem [resolvable:$true] %s161
          %164 = dma.hbm_to_vmem [thread:$0]  %s160, 128, %s162, %s150
        $region28: #{tpu_custom_call.1} parent=23 // pred_fallthru
          _
      $region24: #{tpu_custom_call.1} parent=5 // pred_fallthru
        _
      %p165 = scmp.le.s32.totalorder 1, %s16
      %p166 = scmp.lt.s32.totalorder %s16, 3
      %p167 = pnand %p165, %p166
      %p168 = pneg %p167
      // Predicated region
      $region29: #{tpu_custom_call.1} parent=5 // pred_check
        _
      $region30: #{tpu_custom_call.1} parent=5 // pred_check_branch
        %170 = sbr.rel (%p167) target = $region32
      $region31: #{tpu_custom_call.1} parent=5 // pred_region
        %s171 = ssub.s32 %s16, 1
        %s172 = sand.u32 %s29, 1
        %s173 = scalar_lea.sflag [#allocation3], %s172
        %s174 = sand.u32 %s29, 1
        %s175 = smul.addr %s174, 8
        %s176 = scalar_lea.vmem [#allocation2], %s175
        // Predicated region
        $region33: #{tpu_custom_call.1} parent=31 // pred_check
          %p177 = pneg %p42
        $region34: #{tpu_custom_call.1} parent=31 // pred_check_branch
          %179 = sbr.rel (%p177) target = $region36
        $region35: #{tpu_custom_call.1} parent=31 // pred_region
          %181 = dma.done %s173, 128
        $region36: #{tpu_custom_call.1} parent=31 // pred_fallthru
          _
        // Predicated region
        $region37: #{tpu_custom_call.1} parent=31 // pred_check
          %p182 = pneg %p63
        $region38: #{tpu_custom_call.1} parent=31 // pred_check_branch
          %184 = sbr.rel (%p182) target = $region40
        $region39: #{tpu_custom_call.1} parent=31 // pred_region
          %186 = dma.done [#allocation6], 512
        $region40: #{tpu_custom_call.1} parent=31 // pred_fallthru
          _
        %s187 = sand.u32 %s29, 1
        %s188 = scalar_lea.sflag [#allocation3], %s187
        %s189 = sand.u32 %s29, 1
        %s190 = smul.addr %s189, 8
        %s191 = scalar_lea.vmem [#allocation2], %s190
        %p192 = pneg %p42
        %p193 = pneg %p39
        %p194 = pneg %p63
        %p195 = pneg %p60
        %p196 = pneg %p84
        %p197 = pneg %p81
        %p198 = pneg %p110
        %p199 = pneg %p107
        %s200 = sand.u32 %s97, 1
        %s201 = scalar_lea.sflag [#allocation4], %s200
        %s202 = sand.u32 %s97, 1
        %s203 = smul.addr %s202, 8
        %s204 = scalar_lea.vmem [#allocation7], %s203
        %v205 = vld [vmem:[%s176] sm:$0xff]
        %vm206 = vcmask 261120
        %v207 = vsel %vm206, %v205, 0.0
        %208 = vadd.xlane.f32.xlu0 %v207
        %v209 = vpop.xlane.xlu0 %208
        %v210 = vrcp.pop 32.0
        %v211 = vmul.f32 32.0, %v210
        %v212 = vsub.f32 1.0, %v211
        %v213 = vmul.f32 %v210, %v212
        %v214 = vadd.f32 %v210, %v213
        %vm215 = vweird.f32 %v210
        %v216 = vsel %vm215, %v210, %v214
        %v217 = vmul.f32 %v209, %v216
        %v218 = vsub.f32 %v205, %v217
        %v219 = vmul.f32 %v218, %v218
        %v220 = vsel %vm206, %v219, 0.0
        %221 = vadd.xlane.f32.xlu0 %v220
        %v222 = vpop.xlane.xlu0 %221
        %v223 = vmul.f32 %v222, %v216
        %v224 = vadd.f32 %v223, 1e-05
        %v225 = vrsqrt.pop %v224
        %v226 = vmul.f32 %v225, %v224
        %v227 = vmul.f32 %v226, %v225
        %v228 = vmul.f32 0.5, %v227
        %v229 = vsub.f32 1.5, %v228
        %v230 = vmul.f32 %v225, %v229
        %vm231 = vweird.f32 %v224
        %vm232 = vweird.f32 %v225
        %vm233 = vmor %vm231, %vm232
        %v234 = vsel %vm233, %v225, %v230
        %v235 = vld [vmem:[#allocation5] sm:$0xff]
        %v236 = vld [vmem:[#allocation5 + $0x8] sm:$0xff]
        %v237 = vld [vmem:[#allocation5 + $0x10] sm:$0xff]
        %v238 = vld [vmem:[#allocation5 + $0x18] sm:$0xff]
        %v240 = vsel %vm206, %v218, 0
        %242 = vmatpush.msra.mxu0 0.0
        %243 = vmatpush.msra.mxu0 0.0
        %244 = vmatpush.msra.mxu0 0.0
        %245 = vmatpush.msra.mxu0 0.0
        %246 = vmatpush.msra.mxu0 0.0
        %247 = vmatpush.msra.mxu0 0.0
        %248 = vmatpush.msra.mxu0 0.0
        %249 = vmatpush.msra.mxu0 0.0
        %250 = vmatpush.msra.mxu0 0.0
        %251 = vmatpush.msra.mxu0 0.0
        %252 = vmatpush.msra.mxu0 0.0
        %253 = vmatpush.msra.mxu0 0.0
        %254 = vmatpush.msra.mxu0 %v238
        %255 = vmatpush.msra.mxu0 %v237
        %256 = vmatpush.msra.mxu0 %v236
        %257 = vmatpush.msra.mxu0 %v235
        %258 = vmatmul.f32.gmra.mxu0 %v240
        %v259 = vpop.f32.mrf.mxu0
        %v260 = vadd.f32 0.0, %v259
        %261 = vdwg.mxu0
        %v262 = vmul.f32 %v260, %v234
        %v263 = vld [vmem:[%s2] sm:$0x1]
        %v265 = vperm.slane %v263, 0
        %v267 = vadd.f32 %v262, %v265
        %268 = vst [vmem:[%s204] sm:$0xff] %v267
        %s269 = sand.u32 %s97, 1
        %s270 = scalar_lea.sflag [#allocation4], %s269
        %s271 = sand.u32 %s97, 1
        %s272 = smul.addr %s271, 8
        %s273 = scalar_lea.vmem [#allocation7], %s272
        // Predicated region
        $region41: #{tpu_custom_call.1} parent=31 // pred_check
          %p274 = pneg %p107
        $region42: #{tpu_custom_call.1} parent=31 // pred_check_branch
          %276 = sbr.rel (%p274) target = $region44
        $region43: #{tpu_custom_call.1} parent=31 // pred_region
          %278 = vsyncadd %s270, 0
          %s279 = smul.addr %s21, 8
          %s280 = scalar_lea.hbm %s3, %s279
          %s282 = sshll.u32 %s273, 4
          %s283 = int_to_ptr.vmem [resolvable:$true] %s282
          %s284 = sshll.u32 %s280, 4
          %s285 = int_to_ptr.hbm [resolvable:$true] %s284
          %287 = dma.vmem_to_hbm [thread:$0]  %s283, 128, %s285, %s270
        $region44: #{tpu_custom_call.1} parent=31 // pred_fallthru
          _
      $region32: #{tpu_custom_call.1} parent=5 // pred_fallthru
        _
      %p288 = scmp.le.s32.totalorder 2, %s16
      // Predicated region
      $region45: #{tpu_custom_call.1} parent=5 // pred_check
        %p289 = pneg %p288
      $region46: #{tpu_custom_call.1} parent=5 // pred_check_branch
        %291 = sbr.rel (%p289) target = $region48
      $region47: #{tpu_custom_call.1} parent=5 // pred_region
        %s292 = ssub.s32 %s16, 2
        // Predicated region
        $region49: #{tpu_custom_call.1} parent=47 // pred_check
          %p293 = pneg %p113
        $region50: #{tpu_custom_call.1} parent=47 // pred_check_branch
          %295 = sbr.rel (%p293) target = $region52
        $region51: #{tpu_custom_call.1} parent=47 // pred_region
          %s296 = sand.u32 %s98, 1
          %s297 = scalar_lea.sflag [#allocation4], %s296
          %s298 = sand.u32 %s98, 1
          %s299 = smul.addr %s298, 8
          %s300 = scalar_lea.vmem [#allocation7], %s299
          %302 = dma.done %s297, 128
        $region52: #{tpu_custom_call.1} parent=47 // pred_fallthru
          _
      $region48: #{tpu_custom_call.1} parent=5 // pred_fallthru
        _
    $region6: #{tpu_custom_call.1} parent=1 // loop_footer
      %s20 = sadd.s32 1, %s16
    $region7: #{tpu_custom_call.1} parent=1 // loop_footer_branch
      %15 = sbr.rel target = $region3
    $region8: #{tpu_custom_call.1} parent=1 // loop_exit
      _
    %303 = vsyncpa [#allocation3], 1
    %s304 = scalar_lea.sflag [#allocation3], 1
    %305 = vsyncpa %s304, 1
    %306 = vsyncpa [#allocation6], 1
    %307 = vsyncpa [#allocation4], 1
    %s308 = scalar_lea.sflag [#allocation4], 1
    %309 = vsyncpa %s308, 1

</llo_original>
